<compile_context>
chip_gen: v7x
topology: tpu7x:2x2x1
jax: 0.10.0
libtpu: 0.0.40
codegen_flags: <defaults>
</compile_context>

<pallas_src>
from functools import partial

import jax
import jax.numpy as jnp
from jax.experimental import pallas as pl
from jax.experimental.pallas import tpu as pltpu

LANE = 128


def policy_net_kernel(x_ref, w1_ref, b1_ref, w2_ref, b2_ref, out_ref):
    A = out_ref.shape[-1]                              # real action count (static)
    x = x_ref[...]                                     # (tb, S)
    # fc1 + ReLU (MXU, f32 accumulation)
    h = jnp.dot(x, w1_ref[...], preferred_element_type=jnp.float32) + b1_ref[...]
    h = jnp.maximum(h, 0.0)                            # (tb, H)
    # fc2 on the lane-dense zero-padded weight (tb, A_pad); padded cols unused.
    logits_pad = jnp.dot(h, w2_ref[...], preferred_element_type=jnp.float32)
    # Softmax restricted to the real A columns only.
    logits = logits_pad[:, :A] + b2_ref[...]           # (tb, A)
    m = jnp.max(logits, axis=-1, keepdims=True)
    e = jnp.exp(logits - m)
    denom = jnp.sum(e, axis=-1, keepdims=True)
    out_ref[...] = (e / denom).astype(out_ref.dtype)


def prepare_params(w1, b1, w2, b2):
    """One-time param prep (hoisted out of the per-call forward):
    cast to f32, make biases (1, -1), and zero-pad w2's output columns to a
    lane-dense multiple of 128 so the fc2 matmul uses natively-tiled operands."""
    H, A = w2.shape
    A_pad = pl.cdiv(A, LANE) * LANE
    w2p = jnp.zeros((H, A_pad), jnp.float32).at[:, :A].set(w2.astype(jnp.float32))
    return (w1.astype(jnp.float32),
            b1.reshape(1, -1).astype(jnp.float32),
            w2p,
            b2.reshape(1, -1).astype(jnp.float32))


@partial(jax.jit, static_argnames=("block_b",))
def policy_net_forward(x, w1, b1, w2p, b2, *, block_b=2048):
    """x: (B, state_dim); w1: (S, H); b1: (1, H); w2p: (H, A_pad) zero-padded;
    b2: (1, A).  Returns softmax probabilities of shape (B, A)."""
    B, S = x.shape
    H = w1.shape[1]
    A = b2.shape[1]
    A_pad = w2p.shape[1]

    # Batch tile: multiple of 8 sublanes (or the whole batch if smaller than 8),
    # capped at block_b.  For large batches keep the grid at >= 4 steps so both
    # v7x TensorCores get >= 2 pipelined steps each (no-op on v5e/v6e).
    if B <= 8:
        tb = B
    else:
        tb = (min(block_b, B) // 8) * 8
        min_steps = 4
        if B > min_steps * 8 and pl.cdiv(B, tb) < min_steps:
            tb = max(8, (pl.cdiv(B, min_steps) // 8) * 8)
    b_pad = pl.cdiv(B, tb) * tb

    xp = x.astype(jnp.float32)
    if b_pad != B:
        xp = jnp.pad(xp, ((0, b_pad - B), (0, 0)))     # fuses under jit
    grid = (b_pad // tb,)

    cost = pl.CostEstimate(
        flops=2 * b_pad * (S * H + H * A_pad),
        transcendentals=b_pad * A,
        bytes_accessed=4 * (b_pad * S + S * H + H + H * A_pad + A + b_pad * A),
    )

    out = pl.pallas_call(
        policy_net_kernel,
        out_shape=jax.ShapeDtypeStruct((b_pad, A), jnp.float32),
        grid_spec=pltpu.PrefetchScalarGridSpec(
            num_scalar_prefetch=0,
            grid=grid,
            in_specs=[
                pl.BlockSpec((tb, S), lambda i: (i, 0)),       # x: row-blocked
                pl.BlockSpec((S, H), lambda i: (0, 0)),        # w1: resident
                pl.BlockSpec((1, H), lambda i: (0, 0)),        # b1: resident
                pl.BlockSpec((H, A_pad), lambda i: (0, 0)),    # w2p: resident
                pl.BlockSpec((1, A), lambda i: (0, 0)),        # b2: resident
            ],
            out_specs=pl.BlockSpec((tb, A), lambda i: (i, 0)),
        ),
        compiler_params=pltpu.CompilerParams(
            dimension_semantics=("parallel",)),
        cost_estimate=cost,
    )(xp, w1, b1, w2p, b2)

    return out[:B]


def init_params(key, state_dim, hidden_dim, action_dim):
    """PyTorch-Linear-style init: U(-1/sqrt(fan_in), 1/sqrt(fan_in)); weights
    stored pre-transposed as (in, out)."""
    k1, k2, k3, k4 = jax.random.split(key, 4)
    bound1 = 1.0 / jnp.sqrt(jnp.float32(state_dim))
    bound2 = 1.0 / jnp.sqrt(jnp.float32(hidden_dim))
    w1 = jax.random.uniform(k1, (state_dim, hidden_dim), jnp.float32, -bound1, bound1)
    b1 = jax.random.uniform(k2, (1, hidden_dim), jnp.float32, -bound1, bound1)
    w2 = jax.random.uniform(k3, (hidden_dim, action_dim), jnp.float32, -bound2, bound2)
    b2 = jax.random.uniform(k4, (1, action_dim), jnp.float32, -bound2, bound2)
    return w1, b1, w2, b2


def _reference(x, w1, b1, w2, b2):
    h = jnp.maximum(x @ w1 + b1, 0.0)
    return jax.nn.softmax(h @ w2 + b2, axis=1)


if __name__ == "__main__":
    state_dim = 4      # CartPole observation dim
    hidden_dim = 128
    action_dim = 2     # CartPole actions

    key = jax.random.PRNGKey(0)
    kx, kp, kbig = jax.random.split(key, 3)
    w1, b1, w2, b2 = init_params(kp, state_dim, hidden_dim, action_dim)
    w1p, b1p, w2p, b2p = prepare_params(w1, b1, w2, b2)   # one-time param prep

    # --- small-batch check (rollout action-selection shapes) ---
    batch = 8
    x = jax.random.normal(kx, (batch, state_dim), jnp.float32)
    probs = jax.block_until_ready(policy_net_forward(x, w1p, b1p, w2p, b2p))
    ref = _reference(x, w1, b1, w2, b2)
    assert probs.shape == (batch, action_dim)
    assert jnp.allclose(probs, ref, atol=1e-3, rtol=1e-3)
    assert jnp.allclose(jnp.sum(probs, axis=1), 1.0, atol=1e-3)

    # --- larger rollout batch (exercises the batch grid / parallel cores) ---
    big_batch = 512
    xb = jax.random.normal(kbig, (big_batch, state_dim), jnp.float32)
    probs_b = jax.block_until_ready(policy_net_forward(xb, w1p, b1p, w2p, b2p))
    ref_b = _reference(xb, w1, b1, w2, b2)
    assert probs_b.shape == (big_batch, action_dim)
    assert jnp.allclose(probs_b, ref_b, atol=1e-3, rtol=1e-3)
    assert jnp.allclose(jnp.sum(probs_b, axis=1), 1.0, atol=1e-3)

    print("KERNEL_OK")
</pallas_src>

<mosaic_0001>
module attributes {stable_mosaic.version = 11 : i64} {
  func.func @policy_net_kernel(%arg0: i32, %arg1: memref<8x4xf32, #tpu.memory_space<vmem>>, %arg2: memref<4x128xf32, #tpu.memory_space<vmem>>, %arg3: memref<1x128xf32, #tpu.memory_space<vmem>>, %arg4: memref<128x128xf32, #tpu.memory_space<vmem>>, %arg5: memref<1x2xf32, #tpu.memory_space<vmem>>, %arg6: memref<8x2xf32, #tpu.memory_space<vmem>>) attributes {dimension_semantics = [#tpu.dimension_semantics<parallel>], iteration_bounds = array<i64: 1>, scalar_prefetch = 0 : i64, scratch_operands = 0 : i64, tpu.core_type = #tpu.core_type<tc>, window_params = [{transform_indices = @transform_0, window_bounds = array<i64: 8, 4>}, {pipeline_mode = #tpu.pipeline_mode<synchronous>, transform_indices = @transform_1, window_bounds = array<i64: 4, 128>}, {pipeline_mode = #tpu.pipeline_mode<synchronous>, transform_indices = @transform_2, window_bounds = array<i64: 1, 128>}, {pipeline_mode = #tpu.pipeline_mode<synchronous>, transform_indices = @transform_3, window_bounds = array<i64: 128, 128>}, {pipeline_mode = #tpu.pipeline_mode<synchronous>, transform_indices = @transform_4, window_bounds = array<i64: 1, 2>}, {transform_indices = @transform_5, window_bounds = array<i64: 8, 2>}]} {
    %c0 = arith.constant 0 : index
    %c0_0 = arith.constant 0 : index
    %0 = vector.load %arg1[%c0, %c0_0] : memref<8x4xf32, #tpu.memory_space<vmem>>, vector<8x4xf32>
    %c0_1 = arith.constant 0 : index
    %c0_2 = arith.constant 0 : index
    %1 = vector.load %arg2[%c0_1, %c0_2] : memref<4x128xf32, #tpu.memory_space<vmem>>, vector<4x128xf32>
    %cst = arith.constant dense<0.000000e+00> : vector<8x128xf32>
    %2 = tpu.matmul %0, %1, %cst {dimension_numbers = #tpu.dot_dimension_numbers<[1], [0], [0], [1], [0, 0, 1, 1], [], []>} : vector<8x4xf32>, vector<4x128xf32>, vector<8x128xf32> -> vector<8x128xf32>
    %c0_3 = arith.constant 0 : index
    %c0_4 = arith.constant 0 : index
    %3 = vector.load %arg3[%c0_3, %c0_4] : memref<1x128xf32, #tpu.memory_space<vmem>>, vector<1x128xf32>
    %4 = vector.broadcast %3 : vector<1x128xf32> to vector<8x128xf32>
    %5 = arith.addf %2, %4 : vector<8x128xf32>
    %cst_5 = arith.constant 0.000000e+00 : f32
    %6 = vector.broadcast %cst_5 : f32 to vector<8x128xf32>
    %7 = arith.maximumf %5, %6 : vector<8x128xf32>
    %c0_6 = arith.constant 0 : index
    %c0_7 = arith.constant 0 : index
    %8 = vector.load %arg4[%c0_6, %c0_7] : memref<128x128xf32, #tpu.memory_space<vmem>>, vector<128x128xf32>
    %cst_8 = arith.constant dense<0.000000e+00> : vector<8x128xf32>
    %9 = tpu.matmul %7, %8, %cst_8 {dimension_numbers = #tpu.dot_dimension_numbers<[1], [0], [0], [1], [0, 0, 1, 1], [], []>} : vector<8x128xf32>, vector<128x128xf32>, vector<8x128xf32> -> vector<8x128xf32>
    %10 = vector.extract_strided_slice %9 {offsets = [0, 0], sizes = [8, 2], strides = [1, 1]} : vector<8x128xf32> to vector<8x2xf32>
    %c0_9 = arith.constant 0 : index
    %c0_10 = arith.constant 0 : index
    %11 = vector.load %arg5[%c0_9, %c0_10] : memref<1x2xf32, #tpu.memory_space<vmem>>, vector<1x2xf32>
    %12 = vector.broadcast %11 : vector<1x2xf32> to vector<8x2xf32>
    %13 = arith.addf %10, %12 : vector<8x2xf32>
    %cst_11 = arith.constant dense<0xFF800000> : vector<8xf32>
    %14 = vector.multi_reduction <maximumf>, %13, %cst_11 [1] : vector<8x2xf32> to vector<8xf32>
    %15 = vector.shape_cast %14 : vector<8xf32> to vector<8x1xf32>
    %16 = vector.broadcast %15 : vector<8x1xf32> to vector<8x2xf32>
    %17 = arith.subf %13, %16 : vector<8x2xf32>
    %18 = math.exp %17 : vector<8x2xf32>
    %cst_12 = arith.constant dense<0.000000e+00> : vector<8xf32>
    %19 = vector.multi_reduction <add>, %18, %cst_12 [1] : vector<8x2xf32> to vector<8xf32>
    %20 = vector.shape_cast %19 : vector<8xf32> to vector<8x1xf32>
    %21 = vector.broadcast %20 : vector<8x1xf32> to vector<8x2xf32>
    %22 = arith.divf %18, %21 : vector<8x2xf32>
    %c0_13 = arith.constant 0 : index
    %c0_14 = arith.constant 0 : index
    %23 = vector.load %arg6[%c0_13, %c0_14] : memref<8x2xf32, #tpu.memory_space<vmem>>, vector<8x2xf32>
    tpu.vector_store %arg6[%c0_13, %c0_14], %22 {strides = array<i32>} : memref<8x2xf32, #tpu.memory_space<vmem>>, vector<8x2xf32>,
    return
  }
  func.func @transform_0(%arg0: i32) -> (i32, i32) {
    %c0_i32 = arith.constant 0 : i32
    %c0_i32_0 = arith.constant 0 : i32
    return %arg0, %c0_i32 : i32, i32
  }
  func.func @transform_1(%arg0: i32) -> (i32, i32) {
    %c0_i32 = arith.constant 0 : i32
    %c0_i32_0 = arith.constant 0 : i32
    %c0_i32_1 = arith.constant 0 : i32
    return %c0_i32, %c0_i32_0 : i32, i32
  }
  func.func @transform_2(%arg0: i32) -> (i32, i32) {
    %c0_i32 = arith.constant 0 : i32
    %c0_i32_0 = arith.constant 0 : i32
    %c0_i32_1 = arith.constant 0 : i32
    return %c0_i32, %c0_i32_0 : i32, i32
  }
  func.func @transform_3(%arg0: i32) -> (i32, i32) {
    %c0_i32 = arith.constant 0 : i32
    %c0_i32_0 = arith.constant 0 : i32
    %c0_i32_1 = arith.constant 0 : i32
    return %c0_i32, %c0_i32_0 : i32, i32
  }
  func.func @transform_4(%arg0: i32) -> (i32, i32) {
    %c0_i32 = arith.constant 0 : i32
    %c0_i32_0 = arith.constant 0 : i32
    %c0_i32_1 = arith.constant 0 : i32
    return %c0_i32, %c0_i32_0 : i32, i32
  }
  func.func @transform_5(%arg0: i32) -> (i32, i32) {
    %c0_i32 = arith.constant 0 : i32
    %c0_i32_0 = arith.constant 0 : i32
    return %arg0, %c0_i32 : i32, i32
  }
}

</mosaic_0001>

<llo_original>
// kernel: policy_net_forward.1
$region0: #{policy_net_forward.1}
  #allocation0 [shape = 'u32[]', space=smem, size = 0x4, offset = 0x4, fixed_abs, tag = 'smem constant byte address 0x4 - core index']
  #allocation1 [shape = 'u32[144,128]{1,0:T(1,128)}', space=vmem, size = 0x12000, scoped, tag = 'internal scratch']
  %s0 = inlined_call_operand.vmem [shape: f32[8,4], index: 0, kind: input, shape index: {}]
  %s1 = inlined_call_operand.vmem [shape: f32[4,128], index: 1, kind: input, shape index: {}]
  %s2 = inlined_call_operand.vmem [shape: f32[1,128], index: 2, kind: input, shape index: {}]
  %s3 = inlined_call_operand.hbm [shape: f32[128,128], index: 3, kind: input, shape index: {}]
  %s4 = inlined_call_operand.vmem [shape: f32[1,2], index: 4, kind: input, shape index: {}]
  %s5 = inlined_call_operand.vmem [shape: f32[8,2], index: 5, kind: output, shape index: {}]
  %s6 = sld [smem:[#allocation0]]
  $region34: #{policy_net_forward.1} parent=0
    _
  %s8 = ssub.s32 1, %s6
  %s9 = scalar_select 0, %s8, %s6
  $region1: #{policy_net_forward.1} parent=0
    #allocation2 [shape = 'u8[65536]{0}', space=vmem, size = 0x10000, scoped, tag = 'input window, operand 3, single buffered']
    #allocation3 [shape = 's32[1]{0}', space=sflag, size = 0x4, scoped, tag = 'scoped memory for policy_net_forward.1']
    %10 = vsyncpa [#allocation3], 0
    // Predicated region
    $region2: #{policy_net_forward.1} parent=1 // pred_check
      _
    $region3: #{policy_net_forward.1} parent=1 // pred_check_branch
      %12 = sbr.rel (0) target = $region5
    $region4: #{policy_net_forward.1} parent=1 // pred_region
      _
    $region5: #{policy_net_forward.1} parent=1 // pred_fallthru
      _
    // Predicated region
    $region6: #{policy_net_forward.1} parent=1 // pred_check
      _
    $region7: #{policy_net_forward.1} parent=1 // pred_check_branch
      %14 = sbr.rel (0) target = $region9
    $region8: #{policy_net_forward.1} parent=1 // pred_region
      _
    $region9: #{policy_net_forward.1} parent=1 // pred_fallthru
      _
    // Predicated region
    $region10: #{policy_net_forward.1} parent=1 // pred_check
      _
    $region11: #{policy_net_forward.1} parent=1 // pred_check_branch
      %16 = sbr.rel (0) target = $region13
    $region12: #{policy_net_forward.1} parent=1 // pred_region
      _
    $region13: #{policy_net_forward.1} parent=1 // pred_fallthru
      _
    // Predicated region
    $region14: #{policy_net_forward.1} parent=1 // pred_check
      _
    $region15: #{policy_net_forward.1} parent=1 // pred_check_branch
      %18 = sbr.rel (0) target = $region17
    $region16: #{policy_net_forward.1} parent=1 // pred_region
      %s20 = ssub.s32 2048, 2048
      %21 = vsyncadd [#allocation3], %s20
      %s22 = sshll.u32 [#allocation2], 4
      %s23 = int_to_ptr.vmem [resolvable:$true] %s22
      %28 = dma.hbm_to_vmem [thread:$0]  %s3, 2048, %s23, [#allocation3], 128, 128, 8
    $region17: #{policy_net_forward.1} parent=1 // pred_fallthru
      _
    // Predicated region
    $region18: #{policy_net_forward.1} parent=1 // pred_check
      _
    $region19: #{policy_net_forward.1} parent=1 // pred_check_branch
      %30 = sbr.rel (0) target = $region21
    $region20: #{policy_net_forward.1} parent=1 // pred_region
      _
    $region21: #{policy_net_forward.1} parent=1 // pred_fallthru
      _
    // Predicated region
    $region22: #{policy_net_forward.1} parent=1 // pred_check
      _
    $region23: #{policy_net_forward.1} parent=1 // pred_check_branch
      %32 = sbr.rel (0) target = $region25
    $region24: #{policy_net_forward.1} parent=1 // pred_region
      %33 = dma.done [#allocation3], 2048
    $region25: #{policy_net_forward.1} parent=1 // pred_fallthru
      _
    %v34 = vld [vmem:[%s0] sm:$0xff]
    %v35 = vld [vmem:[%s1] sm:$0xf]
    %v36 = vld [vmem:[%s2] sm:$0x1]
    %v38 = vlaneseq
    %v39 = vshrl.u32 %v38, 7
    %v40 = vsub.s32 0, %v39
    %v41 = vrot.slane %v36, %v40
    %vm43 = vcmask 31744
    %v45 = vsel %vm43, %v34, 0
    %vm47 = vcmask 1043456
    %v49 = vsel %vm47, %v35, 0
    %51 = vmatprep.subr.mxu0 0.0
    %52 = vmatpush1.msra.mxu0 %v49
    %53 = vmatprep.subr.mxu0 0.0
    %54 = vmatpush1.msra.mxu0 0.0
    %55 = vmatprep.subr.mxu0 0.0
    %56 = vmatpush1.msra.mxu0 0.0
    %57 = vmatprep.subr.mxu0 0.0
    %58 = vmatpush1.msra.mxu0 0.0
    %59 = vmatprep.subr.mxu0 0.0
    %60 = vmatpush1.msra.mxu0 0.0
    %61 = vmatprep.subr.mxu0 0.0
    %62 = vmatpush1.msra.mxu0 0.0
    %63 = vmatprep.subr.mxu0 0.0
    %64 = vmatpush1.msra.mxu0 0.0
    %65 = vmatprep.subr.mxu0 0.0
    %66 = vmatpush1.msra.mxu0 0.0
    %67 = vmatprep.subr.mxu0 0.0
    %68 = vmatpush1.msra.mxu0 0.0
    %69 = vmatprep.subr.mxu0 0.0
    %70 = vmatpush1.msra.mxu0 0.0
    %71 = vmatprep.subr.mxu0 0.0
    %72 = vmatpush1.msra.mxu0 0.0
    %73 = vmatprep.subr.mxu0 0.0
    %74 = vmatpush1.msra.mxu0 0.0
    %75 = vmatprep.subr.mxu0 0.0
    %76 = vmatpush1.msra.mxu0 0.0
    %77 = vmatprep.subr.mxu0 0.0
    %78 = vmatpush1.msra.mxu0 0.0
    %79 = vmatprep.subr.mxu0 0.0
    %80 = vmatpush1.msra.mxu0 0.0
    %81 = vmatprep.subr.mxu0 0.0
    %82 = vmatpush1.msra.mxu0 0.0
    %83 = vmatprep.subr.mxu0 0.0
    %84 = vmatpush1.msra.mxu0 0.0
    %85 = vmatprep.subr.mxu0 0.0
    %86 = vmatpush1.msra.mxu0 0.0
    %87 = vmatprep.subr.mxu0 0.0
    %88 = vmatpush1.msra.mxu0 0.0
    %89 = vmatprep.subr.mxu0 0.0
    %90 = vmatpush1.msra.mxu0 0.0
    %91 = vmatprep.subr.mxu0 0.0
    %92 = vmatpush1.msra.mxu0 0.0
    %93 = vmatprep.subr.mxu0 0.0
    %94 = vmatpush1.msra.mxu0 0.0
    %95 = vmatprep.subr.mxu0 0.0
    %96 = vmatpush1.msra.mxu0 0.0
    %97 = vmatprep.subr.mxu0 0.0
    %98 = vmatpush1.msra.mxu0 0.0
    %99 = vmatprep.subr.mxu0 0.0
    %100 = vmatpush1.msra.mxu0 0.0
    %101 = vmatprep.subr.mxu0 0.0
    %102 = vmatpush1.msra.mxu0 0.0
    %103 = vmatprep.subr.mxu0 0.0
    %104 = vmatpush1.msra.mxu0 0.0
    %105 = vmatprep.subr.mxu0 0.0
    %106 = vmatpush1.msra.mxu0 0.0
    %107 = vmatprep.subr.mxu0 0.0
    %108 = vmatpush1.msra.mxu0 0.0
    %109 = vmatprep.subr.mxu0 0.0
    %110 = vmatpush1.msra.mxu0 0.0
    %111 = vmatprep.subr.mxu0 0.0
    %112 = vmatpush1.msra.mxu0 0.0
    %113 = vmatprep.subr.mxu0 0.0
    %114 = vmatpush1.msra.mxu0 0.0
    %115 = vmatprep.mubr.f32.mxu0 0.0
    %116 = vmatmul.mubr.f32.gmra.mrb[0].mxu0 %v45
    %v117 = vpop.f32.mrb[0].mxu0
    %v118 = vadd.f32 %v41, %v117
    %v119 = vpop.f32.mrb[0].mxu0
    %120 = vdwg.mxu0
    %v121 = vmax.f32 %v118, 0.0
    %v122 = vld [vmem:[#allocation2] sm:$0xff]
    %v123 = vld [vmem:[#allocation2 + $0x8] sm:$0xff]
    %v124 = vld [vmem:[#allocation2 + $0x10] sm:$0xff]
    %v125 = vld [vmem:[#allocation2 + $0x18] sm:$0xff]
    %v126 = vld [vmem:[#allocation2 + $0x20] sm:$0xff]
    %v127 = vld [vmem:[#allocation2 + $0x28] sm:$0xff]
    %v128 = vld [vmem:[#allocation2 + $0x30] sm:$0xff]
    %v129 = vld [vmem:[#allocation2 + $0x38] sm:$0xff]
    %v130 = vld [vmem:[#allocation2 + $0x40] sm:$0xff]
    %v131 = vld [vmem:[#allocation2 + $0x48] sm:$0xff]
    %v132 = vld [vmem:[#allocation2 + $0x50] sm:$0xff]
    %v133 = vld [vmem:[#allocation2 + $0x58] sm:$0xff]
    %v134 = vld [vmem:[#allocation2 + $0x60] sm:$0xff]
    %v135 = vld [vmem:[#allocation2 + $0x68] sm:$0xff]
    %v136 = vld [vmem:[#allocation2 + $0x70] sm:$0xff]
    %v137 = vld [vmem:[#allocation2 + $0x78] sm:$0xff]
    %138 = vmatprep.subr.mxu0 0.0
    %139 = vmatpush1.msra.mxu0 %v122
    %140 = vmatprep.subr.mxu0 0.0
    %141 = vmatpush1.msra.mxu0 %v123
    %142 = vmatprep.subr.mxu0 0.0
    %143 = vmatpush1.msra.mxu0 %v124
    %144 = vmatprep.subr.mxu0 0.0
    %145 = vmatpush1.msra.mxu0 %v125
    %146 = vmatprep.subr.mxu0 0.0
    %147 = vmatpush1.msra.mxu0 %v126
    %148 = vmatprep.subr.mxu0 0.0
    %149 = vmatpush1.msra.mxu0 %v127
    %150 = vmatprep.subr.mxu0 0.0
    %151 = vmatpush1.msra.mxu0 %v128
    %152 = vmatprep.subr.mxu0 0.0
    %153 = vmatpush1.msra.mxu0 %v129
    %154 = vmatprep.subr.mxu0 0.0
    %155 = vmatpush1.msra.mxu0 %v130
    %156 = vmatprep.subr.mxu0 0.0
    %157 = vmatpush1.msra.mxu0 %v131
    %158 = vmatprep.subr.mxu0 0.0
    %159 = vmatpush1.msra.mxu0 %v132
    %160 = vmatprep.subr.mxu0 0.0
    %161 = vmatpush1.msra.mxu0 %v133
    %162 = vmatprep.subr.mxu0 0.0
    %163 = vmatpush1.msra.mxu0 %v134
    %164 = vmatprep.subr.mxu0 0.0
    %165 = vmatpush1.msra.mxu0 %v135
    %166 = vmatprep.subr.mxu0 0.0
    %167 = vmatpush1.msra.mxu0 %v136
    %168 = vmatprep.subr.mxu0 0.0
    %169 = vmatpush1.msra.mxu0 %v137
    %170 = vmatprep.subr.mxu0 0.0
    %171 = vmatpush1.msra.mxu0 0.0
    %172 = vmatprep.subr.mxu0 0.0
    %173 = vmatpush1.msra.mxu0 0.0
    %174 = vmatprep.subr.mxu0 0.0
    %175 = vmatpush1.msra.mxu0 0.0
    %176 = vmatprep.subr.mxu0 0.0
    %177 = vmatpush1.msra.mxu0 0.0
    %178 = vmatprep.subr.mxu0 0.0
    %179 = vmatpush1.msra.mxu0 0.0
    %180 = vmatprep.subr.mxu0 0.0
    %181 = vmatpush1.msra.mxu0 0.0
    %182 = vmatprep.subr.mxu0 0.0
    %183 = vmatpush1.msra.mxu0 0.0
    %184 = vmatprep.subr.mxu0 0.0
    %185 = vmatpush1.msra.mxu0 0.0
    %186 = vmatprep.subr.mxu0 0.0
    %187 = vmatpush1.msra.mxu0 0.0
    %188 = vmatprep.subr.mxu0 0.0
    %189 = vmatpush1.msra.mxu0 0.0
    %190 = vmatprep.subr.mxu0 0.0
    %191 = vmatpush1.msra.mxu0 0.0
    %192 = vmatprep.subr.mxu0 0.0
    %193 = vmatpush1.msra.mxu0 0.0
    %194 = vmatprep.subr.mxu0 0.0
    %195 = vmatpush1.msra.mxu0 0.0
    %196 = vmatprep.subr.mxu0 0.0
    %197 = vmatpush1.msra.mxu0 0.0
    %198 = vmatprep.subr.mxu0 0.0
    %199 = vmatpush1.msra.mxu0 0.0
    %200 = vmatprep.subr.mxu0 0.0
    %201 = vmatpush1.msra.mxu0 0.0
    %202 = vmatprep.mubr.f32.mxu0 0.0
    %203 = vmatmul.mubr.f32.gmra.mrb[0].mxu0 %v121
    %v204 = vpop.f32.mrb[0].mxu0
    %v205 = vadd.f32 0.0, %v204
    %v206 = vpop.f32.mrb[0].mxu0
    %207 = vdwg.mxu0
    %v208 = vld [vmem:[%s4] sm:$0x1]
    %v210 = vlaneseq
    %v211 = vshrl.u32 %v210, 7
    %v212 = vsub.s32 0, %v211
    %v213 = vrot.slane %v208, %v212
    %v215 = vadd.f32 %v205, %v213
    %vm216 = vcmask 15360
    %v217 = vsel %vm216, %v215, -inf
    %218 = vmax.xlane.f32.xlu0 %v217
    %v219 = vpop.xlane.xlu0 %218
    %v220 = vsub.f32 %v215, %v219
    %v221 = vmul.f32 %v220, 1.442695
    %v222 = vpow.pop %v221
    %v223 = vsel %vm216, %v222, 0.0
    %224 = vadd.xlane.f32.xlu0 %v223
    %v225 = vpop.xlane.xlu0 %224
    %v226 = vrcp.pop %v225
    %v227 = vmul.f32 %v222, %v226
    %228 = vst.msk [vmem:[%s5] sm:$0xff] %vm216, %v227
    // Predicated region
    $region26: #{policy_net_forward.1} parent=1 // pred_check
      _
    $region27: #{policy_net_forward.1} parent=1 // pred_check_branch
      %230 = sbr.rel (0) target = $region29
    $region28: #{policy_net_forward.1} parent=1 // pred_region
      _
    $region29: #{policy_net_forward.1} parent=1 // pred_fallthru
      _
    // Predicated region
    $region30: #{policy_net_forward.1} parent=1 // pred_check
      _
    $region31: #{policy_net_forward.1} parent=1 // pred_check_branch
      %232 = sbr.rel (0) target = $region33
    $region32: #{policy_net_forward.1} parent=1 // pred_region
      _
    $region33: #{policy_net_forward.1} parent=1 // pred_fallthru
      _
    %233 = vsyncpa [#allocation3], 1

</llo_original>
